<compile_context>
chip_gen: v5e
topology: v5e:2x2
jax: 0.10.0
libtpu: 0.0.40
codegen_flags: <defaults>
</compile_context>

<pallas_src>
import jax
import jax.numpy as jnp
from jax.experimental import pallas as pl
from jax.experimental.pallas import tpu as pltpu


def _round_up(n, m):
    return ((n + m - 1) // m) * m


def _vmem_limit_bytes():
    """Generation-aware scoped-VMEM limit: most of physical minus headroom."""
    try:
        cap = int(pltpu.get_tpu_info().vmem_capacity_bytes)
    except Exception:
        cap = 64 * 1024 * 1024  # conservative fallback: v7x per-core VMEM
    # ~12.5% headroom for Mosaic internal scratch / semaphores; never ask for
    # more than ~110 MiB even on 128 MiB (v5e/v6e) parts.
    return int(min(cap - cap // 8, 110 * 1024 * 1024))


def _triplet_mlp_kernel(x_ref, y_ref, z_ref, w1_ref, b1_ref, w2_ref, b2_ref,
                        ox_ref, oy_ref, oz_ref, acc_ref):
    k = pl.program_id(1)

    @pl.when(k == 0)
    def _():
        acc_ref[...] = jnp.zeros_like(acc_ref)

    # Fuse the triplet: one (3*tm, tk) LHS -> a single MXU pass per w1 K-tile
    # instead of three (3x fewer RHS weight pushes).
    a = jnp.concatenate([x_ref[...], y_ref[...], z_ref[...]], axis=0)
    # TODO(synk): cast `a` and w1 to bfloat16 (f32 accumulate) if the 1e-4
    # f32-parity requirement is relaxed -- ~3x MXU rate + half w1 traffic.
    acc_ref[...] += jnp.dot(a, w1_ref[...], preferred_element_type=jnp.float32)

    @pl.when(k == pl.num_programs(1) - 1)
    def _():
        tm = ox_ref.shape[0]
        h = jnp.maximum(acc_ref[...] + b1_ref[...], 0.0)
        o = jnp.dot(h, w2_ref[...], preferred_element_type=jnp.float32)
        o = o + b2_ref[...]
        ox_ref[...] = o[:tm].astype(ox_ref.dtype)
        oy_ref[...] = o[tm:2 * tm].astype(oy_ref.dtype)
        oz_ref[...] = o[2 * tm:].astype(oz_ref.dtype)


def embed_triplet_pallas(xf, yf, zf, w1, b1, w2, b2):
    """xf/yf/zf: [B, F] f32 -> three [B, E] f32 embeddings (shared MLP)."""
    b, f = xf.shape
    hdim = w1.shape[1]
    e = w2.shape[1]

    # --- lane-dense padding of hidden / output dims to multiples of 128 ----
    hp = _round_up(hdim, 128)
    ep = _round_up(e, 128)
    if hp != hdim:
        w1 = jnp.pad(w1, ((0, 0), (0, hp - hdim)))
        b1 = jnp.pad(b1, ((0, 0), (0, hp - hdim)))
        w2 = jnp.pad(w2, ((0, hp - hdim), (0, 0)))
    if ep != e:
        w2 = jnp.pad(w2, ((0, 0), (0, ep - e)))
        b2 = jnp.pad(b2, ((0, 0), (0, ep - e)))

    # --- K (feature) tiling: VMEM is O(tm*tk), independent of F -------------
    tk = min(_round_up(f, 128), 512)
    fp = _round_up(f, tk)
    if fp != f:
        padf = ((0, 0), (0, fp - f))
        xf = jnp.pad(xf, padf)
        yf = jnp.pad(yf, padf)
        zf = jnp.pad(zf, padf)
        w1 = jnp.pad(w1, ((0, fp - f), (0, 0)))

    # --- row tiling with bounded zero-padding waste --------------------------
    pb = _round_up(b, 8)
    tm = min(128, pb)
    while tm > 8 and _round_up(pb, tm) - pb > tm // 2:
        tm //= 2
    pb = _round_up(pb, tm)
    if pb != b:
        padr = ((0, pb - b), (0, 0))
        xf = jnp.pad(xf, padr)
        yf = jnp.pad(yf, padr)
        zf = jnp.pad(zf, padr)

    nrow = pb // tm
    nk = fp // tk
    grid = (nrow, nk)

    row_spec = pl.BlockSpec((tm, tk), lambda i, k: (i, k))
    out_spec = pl.BlockSpec((tm, ep), lambda i, k: (i, 0))
    in_specs = [
        row_spec, row_spec, row_spec,
        pl.BlockSpec((tk, hp), lambda i, k: (k, 0)),   # w1 K-tile (streamed)
        pl.BlockSpec((1, hp), lambda i, k: (0, 0)),    # b1 (VMEM resident)
        pl.BlockSpec((hp, ep), lambda i, k: (0, 0)),   # w2 (VMEM resident)
        pl.BlockSpec((1, ep), lambda i, k: (0, 0)),    # b2 (VMEM resident)
    ]

    # --- scheduling hints -----------------------------------------------------
    flops = 2 * 3 * pb * (fp * hp + hp * ep)
    bytes_accessed = 4 * (3 * pb * fp          # activations in
                          + nrow * fp * hp     # w1 tiles re-read per row tile
                          + hp * ep + hp + ep  # w2 / biases
                          + 3 * pb * ep)       # outputs

    out_shape = jax.ShapeDtypeStruct((pb, ep), jnp.float32)

    ox, oy, oz = pl.pallas_call(
        _triplet_mlp_kernel,
        out_shape=(out_shape, out_shape, out_shape),
        grid_spec=pltpu.PrefetchScalarGridSpec(
            num_scalar_prefetch=0,
            grid=grid,
            in_specs=in_specs,
            out_specs=(out_spec, out_spec, out_spec),
            scratch_shapes=[pltpu.VMEM((3 * tm, hp), jnp.float32)],
        ),
        compiler_params=pltpu.CompilerParams(
            dimension_semantics=("parallel", "arbitrary"),
            vmem_limit_bytes=_vmem_limit_bytes(),
        ),
        cost_estimate=pl.CostEstimate(
            flops=flops, transcendentals=0, bytes_accessed=bytes_accessed),
    )(xf, yf, zf, w1, b1, w2, b2)

    # Slice away row padding and lane padding outside the kernel.
    return ox[:b, :e], oy[:b, :e], oz[:b, :e]


def init_embedding_params(key, in_features, hidden, embed_dim):
    k1, k2 = jax.random.split(key)
    w1 = jax.random.normal(k1, (in_features, hidden), jnp.float32) * 0.02
    b1 = jnp.zeros((1, hidden), jnp.float32)
    w2 = jax.random.normal(k2, (hidden, embed_dim), jnp.float32) * 0.02
    b2 = jnp.zeros((1, embed_dim), jnp.float32)
    return w1, b1, w2, b2


def tripletnet_forward(x, y, z, params):
    """Mirrors Tripletnet.forward: returns (emb_x, emb_y, emb_z).

    x, y, z: [B, C, H, W] float32 (NCHW, same as PyTorch).
    """
    w1, b1, w2, b2 = params
    b = x.shape[0]
    # PyTorch-style flatten: a.view(B, -1) on NCHW.
    xf = x.reshape(b, -1)
    yf = y.reshape(b, -1)
    zf = z.reshape(b, -1)
    return embed_triplet_pallas(xf, yf, zf, w1, b1, w2, b2)


if __name__ == "__main__":
    B, C, H, W = 2, 4, 16, 16
    HIDDEN, EMBED = 128, 32
    F_IN = C * H * W

    key = jax.random.PRNGKey(0)
    kx, ky, kz, kp = jax.random.split(key, 4)
    x = jax.random.normal(kx, (B, C, H, W), jnp.float32)
    y = jax.random.normal(ky, (B, C, H, W), jnp.float32)
    z = jax.random.normal(kz, (B, C, H, W), jnp.float32)

    params = init_embedding_params(kp, F_IN, HIDDEN, EMBED)

    fwd = jax.jit(tripletnet_forward)
    emb_x, emb_y, emb_z = fwd(x, y, z, params)
    jax.block_until_ready((emb_x, emb_y, emb_z))

    # Sanity-check against a plain-JAX reference of the same embedding net.
    def ref_embed(a):
        w1, b1, w2, b2 = params
        af = a.reshape(a.shape[0], -1)
        h = jnp.maximum(af @ w1 + b1, 0.0)
        return h @ w2 + b2

    rx, ry, rz = ref_embed(x), ref_embed(y), ref_embed(z)
    assert emb_x.shape == (B, EMBED)
    assert emb_y.shape == (B, EMBED)
    assert emb_z.shape == (B, EMBED)
    assert jnp.allclose(emb_x, rx, atol=1e-4)
    assert jnp.allclose(emb_y, ry, atol=1e-4)
    assert jnp.allclose(emb_z, rz, atol=1e-4)

    print("KERNEL_OK")
</pallas_src>

<mosaic_0001>
module attributes {stable_mosaic.version = 11 : i64} {
  func.func @_triplet_mlp_kernel(%arg0: i32, %arg1: i32, %arg2: memref<8x512xf32, #tpu.memory_space<vmem>>, %arg3: memref<8x512xf32, #tpu.memory_space<vmem>>, %arg4: memref<8x512xf32, #tpu.memory_space<vmem>>, %arg5: memref<512x128xf32, #tpu.memory_space<vmem>>, %arg6: memref<1x128xf32, #tpu.memory_space<vmem>>, %arg7: memref<128x128xf32, #tpu.memory_space<vmem>>, %arg8: memref<1x128xf32, #tpu.memory_space<vmem>>, %arg9: memref<8x128xf32, #tpu.memory_space<vmem>>, %arg10: memref<8x128xf32, #tpu.memory_space<vmem>>, %arg11: memref<8x128xf32, #tpu.memory_space<vmem>>, %arg12: memref<24x128xf32, #tpu.memory_space<vmem>>) attributes {dimension_semantics = [#tpu.dimension_semantics<parallel>, #tpu.dimension_semantics<arbitrary>], iteration_bounds = array<i64: 1, 2>, scalar_prefetch = 0 : i64, scratch_operands = 1 : i64, tpu.core_type = #tpu.core_type<tc>, window_params = [{transform_indices = @transform_0, window_bounds = array<i64: 8, 512>}, {transform_indices = @transform_1, window_bounds = array<i64: 8, 512>}, {transform_indices = @transform_2, window_bounds = array<i64: 8, 512>}, {transform_indices = @transform_3, window_bounds = array<i64: 512, 128>}, {pipeline_mode = #tpu.pipeline_mode<synchronous>, transform_indices = @transform_4, window_bounds = array<i64: 1, 128>}, {pipeline_mode = #tpu.pipeline_mode<synchronous>, transform_indices = @transform_5, window_bounds = array<i64: 128, 128>}, {pipeline_mode = #tpu.pipeline_mode<synchronous>, transform_indices = @transform_6, window_bounds = array<i64: 1, 128>}, {transform_indices = @transform_7, window_bounds = array<i64: 8, 128>}, {transform_indices = @transform_8, window_bounds = array<i64: 8, 128>}, {transform_indices = @transform_9, window_bounds = array<i64: 8, 128>}]} {
    %c0_i32 = arith.constant 0 : i32
    %0 = arith.cmpi eq, %arg1, %c0_i32 : i32
    %1 = arith.extui %0 : i1 to i32
    %c0_i32_0 = arith.constant 0 : i32
    %2 = arith.cmpi ne, %1, %c0_i32_0 : i32
    scf.if %2 {
      %cst_13 = arith.constant 0.000000e+00 : f32
      %15 = vector.broadcast %cst_13 : f32 to vector<24x128xf32>
      %c0_14 = arith.constant 0 : index
      %c0_15 = arith.constant 0 : index
      %16 = vector.load %arg12[%c0_14, %c0_15] : memref<24x128xf32, #tpu.memory_space<vmem>>, vector<24x128xf32>
      tpu.vector_store %arg12[%c0_14, %c0_15], %15 {strides = array<i32>} : memref<24x128xf32, #tpu.memory_space<vmem>>, vector<24x128xf32>,
    } else {
    }
    %c0 = arith.constant 0 : index
    %c0_1 = arith.constant 0 : index
    %3 = vector.load %arg2[%c0, %c0_1] : memref<8x512xf32, #tpu.memory_space<vmem>>, vector<8x512xf32>
    %c0_2 = arith.constant 0 : index
    %c0_3 = arith.constant 0 : index
    %4 = vector.load %arg3[%c0_2, %c0_3] : memref<8x512xf32, #tpu.memory_space<vmem>>, vector<8x512xf32>
    %c0_4 = arith.constant 0 : index
    %c0_5 = arith.constant 0 : index
    %5 = vector.load %arg4[%c0_4, %c0_5] : memref<8x512xf32, #tpu.memory_space<vmem>>, vector<8x512xf32>
    %6 = tpu.concatenate %3, %4, %5 in 0 : vector<8x512xf32>, vector<8x512xf32>, vector<8x512xf32> -> vector<24x512xf32>
    %c0_6 = arith.constant 0 : index
    %c0_7 = arith.constant 0 : index
    %7 = vector.load %arg12[%c0_6, %c0_7] : memref<24x128xf32, #tpu.memory_space<vmem>>, vector<24x128xf32>
    %c0_8 = arith.constant 0 : index
    %c0_9 = arith.constant 0 : index
    %8 = vector.load %arg5[%c0_8, %c0_9] : memref<512x128xf32, #tpu.memory_space<vmem>>, vector<512x128xf32>
    %cst = arith.constant dense<0.000000e+00> : vector<24x128xf32>
    %9 = tpu.matmul %6, %8, %cst {dimension_numbers = #tpu.dot_dimension_numbers<[1], [0], [0], [1], [0, 0, 1, 1], [], []>} : vector<24x512xf32>, vector<512x128xf32>, vector<24x128xf32> -> vector<24x128xf32>
    %10 = arith.addf %7, %9 : vector<24x128xf32>
    %c0_10 = arith.constant 0 : index
    %c0_11 = arith.constant 0 : index
    %11 = vector.load %arg12[%c0_10, %c0_11] : memref<24x128xf32, #tpu.memory_space<vmem>>, vector<24x128xf32>
    tpu.vector_store %arg12[%c0_10, %c0_11], %10 {strides = array<i32>} : memref<24x128xf32, #tpu.memory_space<vmem>>, vector<24x128xf32>,
    %c1_i32 = arith.constant 1 : i32
    %12 = arith.cmpi eq, %arg1, %c1_i32 : i32
    %13 = arith.extui %12 : i1 to i32
    %c0_i32_12 = arith.constant 0 : i32
    %14 = arith.cmpi ne, %13, %c0_i32_12 : i32
    scf.if %14 {
      %c0_13 = arith.constant 0 : index
      %c0_14 = arith.constant 0 : index
      %15 = vector.load %arg12[%c0_13, %c0_14] : memref<24x128xf32, #tpu.memory_space<vmem>>, vector<24x128xf32>
      %c0_15 = arith.constant 0 : index
      %c0_16 = arith.constant 0 : index
      %16 = vector.load %arg6[%c0_15, %c0_16] : memref<1x128xf32, #tpu.memory_space<vmem>>, vector<1x128xf32>
      %17 = vector.broadcast %16 : vector<1x128xf32> to vector<24x128xf32>
      %18 = arith.addf %15, %17 : vector<24x128xf32>
      %cst_17 = arith.constant 0.000000e+00 : f32
      %19 = vector.broadcast %cst_17 : f32 to vector<24x128xf32>
      %20 = arith.maximumf %18, %19 : vector<24x128xf32>
      %c0_18 = arith.constant 0 : index
      %c0_19 = arith.constant 0 : index
      %21 = vector.load %arg7[%c0_18, %c0_19] : memref<128x128xf32, #tpu.memory_space<vmem>>, vector<128x128xf32>
      %cst_20 = arith.constant dense<0.000000e+00> : vector<24x128xf32>
      %22 = tpu.matmul %20, %21, %cst_20 {dimension_numbers = #tpu.dot_dimension_numbers<[1], [0], [0], [1], [0, 0, 1, 1], [], []>} : vector<24x128xf32>, vector<128x128xf32>, vector<24x128xf32> -> vector<24x128xf32>
      %c0_21 = arith.constant 0 : index
      %c0_22 = arith.constant 0 : index
      %23 = vector.load %arg8[%c0_21, %c0_22] : memref<1x128xf32, #tpu.memory_space<vmem>>, vector<1x128xf32>
      %24 = vector.broadcast %23 : vector<1x128xf32> to vector<24x128xf32>
      %25 = arith.addf %22, %24 : vector<24x128xf32>
      %26 = vector.extract_strided_slice %25 {offsets = [0, 0], sizes = [8, 128], strides = [1, 1]} : vector<24x128xf32> to vector<8x128xf32>
      %c0_23 = arith.constant 0 : index
      %c0_24 = arith.constant 0 : index
      %27 = vector.load %arg9[%c0_23, %c0_24] : memref<8x128xf32, #tpu.memory_space<vmem>>, vector<8x128xf32>
      tpu.vector_store %arg9[%c0_23, %c0_24], %26 {strides = array<i32>} : memref<8x128xf32, #tpu.memory_space<vmem>>, vector<8x128xf32>,
      %28 = vector.extract_strided_slice %25 {offsets = [8, 0], sizes = [8, 128], strides = [1, 1]} : vector<24x128xf32> to vector<8x128xf32>
      %c0_25 = arith.constant 0 : index
      %c0_26 = arith.constant 0 : index
      %29 = vector.load %arg10[%c0_25, %c0_26] : memref<8x128xf32, #tpu.memory_space<vmem>>, vector<8x128xf32>
      tpu.vector_store %arg10[%c0_25, %c0_26], %28 {strides = array<i32>} : memref<8x128xf32, #tpu.memory_space<vmem>>, vector<8x128xf32>,
      %30 = vector.extract_strided_slice %25 {offsets = [16, 0], sizes = [8, 128], strides = [1, 1]} : vector<24x128xf32> to vector<8x128xf32>
      %c0_27 = arith.constant 0 : index
      %c0_28 = arith.constant 0 : index
      %31 = vector.load %arg11[%c0_27, %c0_28] : memref<8x128xf32, #tpu.memory_space<vmem>>, vector<8x128xf32>
      tpu.vector_store %arg11[%c0_27, %c0_28], %30 {strides = array<i32>} : memref<8x128xf32, #tpu.memory_space<vmem>>, vector<8x128xf32>,
    } else {
    }
    return
  }
  func.func @transform_0(%arg0: i32, %arg1: i32) -> (i32, i32) {
    %c0_i32 = arith.constant 0 : i32
    return %arg0, %arg1 : i32, i32
  }
  func.func @transform_1(%arg0: i32, %arg1: i32) -> (i32, i32) {
    %c0_i32 = arith.constant 0 : i32
    return %arg0, %arg1 : i32, i32
  }
  func.func @transform_2(%arg0: i32, %arg1: i32) -> (i32, i32) {
    %c0_i32 = arith.constant 0 : i32
    return %arg0, %arg1 : i32, i32
  }
  func.func @transform_3(%arg0: i32, %arg1: i32) -> (i32, i32) {
    %c0_i32 = arith.constant 0 : i32
    %c0_i32_0 = arith.constant 0 : i32
    return %arg1, %c0_i32 : i32, i32
  }
  func.func @transform_4(%arg0: i32, %arg1: i32) -> (i32, i32) {
    %c0_i32 = arith.constant 0 : i32
    %c0_i32_0 = arith.constant 0 : i32
    %c0_i32_1 = arith.constant 0 : i32
    return %c0_i32, %c0_i32_0 : i32, i32
  }
  func.func @transform_5(%arg0: i32, %arg1: i32) -> (i32, i32) {
    %c0_i32 = arith.constant 0 : i32
    %c0_i32_0 = arith.constant 0 : i32
    %c0_i32_1 = arith.constant 0 : i32
    return %c0_i32, %c0_i32_0 : i32, i32
  }
  func.func @transform_6(%arg0: i32, %arg1: i32) -> (i32, i32) {
    %c0_i32 = arith.constant 0 : i32
    %c0_i32_0 = arith.constant 0 : i32
    %c0_i32_1 = arith.constant 0 : i32
    return %c0_i32, %c0_i32_0 : i32, i32
  }
  func.func @transform_7(%arg0: i32, %arg1: i32) -> (i32, i32) {
    %c0_i32 = arith.constant 0 : i32
    %c0_i32_0 = arith.constant 0 : i32
    return %arg0, %c0_i32 : i32, i32
  }
  func.func @transform_8(%arg0: i32, %arg1: i32) -> (i32, i32) {
    %c0_i32 = arith.constant 0 : i32
    %c0_i32_0 = arith.constant 0 : i32
    return %arg0, %c0_i32 : i32, i32
  }
  func.func @transform_9(%arg0: i32, %arg1: i32) -> (i32, i32) {
    %c0_i32 = arith.constant 0 : i32
    %c0_i32_0 = arith.constant 0 : i32
    return %arg0, %c0_i32 : i32, i32
  }
}

</mosaic_0001>

<llo_original>
// kernel: tripletnet_forward.1
$region0: #{tripletnet_forward.1}
  #allocation0 [shape = 'u32[]', space=smem, size = 0x4, offset = 0x4, fixed_abs, tag = 'smem constant byte address 0x4 - core index']
  #allocation1 [shape = 'u32[72,128]{1,0:T(1,128)}', space=vmem, size = 0x9000, scoped, tag = 'internal scratch']
  #allocation2 [shape = 'f32[24,128]{1,0:T(8,128)}', space=vmem, size = 0x3000, scoped, tag = 'scratch operand']
  %s0 = inlined_call_operand.vmem [shape: f32[8,1024], index: 0, kind: input, shape index: {}]
  %s1 = inlined_call_operand.vmem [shape: f32[8,1024], index: 1, kind: input, shape index: {}]
  %s2 = inlined_call_operand.vmem [shape: f32[8,1024], index: 2, kind: input, shape index: {}]
  %s3 = inlined_call_operand.vmem [shape: f32[1024,128], index: 3, kind: input, shape index: {}]
  %s4 = inlined_call_operand.vmem [shape: f32[1,128], index: 4, kind: input, shape index: {}]
  %s5 = inlined_call_operand.vmem [shape: f32[128,128], index: 5, kind: input, shape index: {}]
  %s6 = inlined_call_operand.vmem [shape: f32[1,128], index: 6, kind: input, shape index: {}]
  %s7 = inlined_call_operand.vmem [shape: f32[8,128], index: 7, kind: output, shape index: {0}]
  %s8 = inlined_call_operand.vmem [shape: f32[8,128], index: 8, kind: output, shape index: {1}]
  %s9 = inlined_call_operand.vmem [shape: f32[8,128], index: 9, kind: output, shape index: {2}]
  %10 = xla_tuple %s7, %s8, %s9
  %s11 = sld [smem:[#allocation0]]
  $region85: #{tripletnet_forward.1} parent=0
    _
  %s13 = ssub.s32 1, %s11
  %s14 = scalar_select 0, %s13, %s11
  loop: start=0, step=1, limit=4
  $region2: #{tripletnet_forward.1} parent=0 // loop_pre_header
    _
  $region3: #{tripletnet_forward.1} parent=0 // loop_header
    %s16 = sphi 0, %s20
    %p17 = scmp.ge.s32.totalorder %s16, 4
    %s23 = sphi 0, %s35
    %s24 = sphi 0, %s31
    %s25 = sphi 0, %s23
    %s26 = sphi 0, %s24
    %s27 = sphi 0, %s25
    %s28 = sphi 0, %s26
    %s40 = sphi 0, %s42
    %s43 = sphi 0, %s40
    %s44 = sphi 0, %s43
    %s60 = sphi 0, %s44
    %s68 = sphi 0, %s70
    %s71 = sphi 0, %s68
    %s72 = sphi 0, %s71
    %s88 = sphi 0, %s72
    %s96 = sphi 0, %s98
    %s99 = sphi 0, %s96
    %s100 = sphi 0, %s99
    %s116 = sphi 0, %s100
    %s122 = sphi 0, %s124
    %s125 = sphi 0, %s122
    %s126 = sphi 0, %s125
    %s142 = sphi 0, %s126
    %s146 = sphi 0, %s146
    %s148 = sphi 0, %s146
    %s149 = sphi 0, %s148
    %s163 = sphi 0, %s149
    %s167 = sphi 0, %s167
    %s169 = sphi 0, %s167
    %s170 = sphi 0, %s169
    %s184 = sphi 0, %s170
    %s188 = sphi 0, %s188
    %s190 = sphi 0, %s188
    %s191 = sphi 0, %s190
    %s205 = sphi 0, %s191
    %s211 = sphi 0, %s213
    %s214 = sphi 0, %s211
    %s215 = sphi 0, %s214
    %s231 = sphi 0, %s215
    %s237 = sphi 0, %s239
    %s240 = sphi 0, %s237
    %s241 = sphi 0, %s240
    %s257 = sphi 0, %s241
    %s263 = sphi 0, %s265
    %s266 = sphi 0, %s263
    %s267 = sphi 0, %s266
    %s283 = sphi 0, %s267
  $region4: #{tripletnet_forward.1} parent=0 // loop_header_branch
    %19 = sbr.rel (%p17) target = $region8
  $region5: #{tripletnet_forward.1} parent=0 // loop_body
    %s21 = ssub.s32 %s16, 1
    %s22 = ssub.s32 %s16, 2
    %s29 = sadd.s32 1, %s24
    %p30 = scmp.ge.s32.totalorder %s29, 2
    %s31 = scalar_select %p30, 0, %s29
    %s32 = sadd.s32 1, %s23
    %s33 = scalar_select %p30, %s32, %s23
    %p34 = scmp.ge.s32.totalorder %s33, 1
    %s35 = scalar_select %p34, 0, %s33
    %s36 = ssub.s32 %s23, %s35
    %s37 = ssub.s32 %s24, %s31
    %s38 = sor.u32 %s36, %s37
    %p39 = scmp.eq.s32.totalorder %s38, 0
    %s41 = sadd.s32 %s40, 1
    %s42 = scalar_select %p39, %s40, %s41
    %p45 = pneg %p39
    %p46 = scmp.eq.s32.totalorder %s16, 1
    %p47 = por %p45, %p46
    %p48 = scmp.ne.s32.totalorder %s40, %s43
    %p49 = scmp.eq.s32.totalorder %s16, 0
    %p50 = por %p48, %p49
    %p51 = scmp.ne.s32.totalorder %s40, %s43
    %p52 = scmp.eq.s32.totalorder %s21, 1
    %p53 = por %p51, %p52
    %p54 = scmp.ne.s32.totalorder %s43, %s44
    %p55 = scmp.eq.s32.totalorder %s21, 0
    %p56 = por %p54, %p55
    %p57 = scmp.ne.s32.totalorder %s43, %s44
    %p58 = scmp.eq.s32.totalorder %s22, 1
    %p59 = por %p57, %p58
    %p61 = scmp.ne.s32.totalorder %s44, %s60
    %p62 = scmp.eq.s32.totalorder %s22, 0
    %p63 = por %p61, %p62
    %s64 = ssub.s32 %s23, %s35
    %s65 = ssub.s32 %s24, %s31
    %s66 = sor.u32 %s64, %s65
    %p67 = scmp.eq.s32.totalorder %s66, 0
    %s69 = sadd.s32 %s68, 1
    %s70 = scalar_select %p67, %s68, %s69
    %p73 = pneg %p67
    %p74 = scmp.eq.s32.totalorder %s16, 1
    %p75 = por %p73, %p74
    %p76 = scmp.ne.s32.totalorder %s68, %s71
    %p77 = scmp.eq.s32.totalorder %s16, 0
    %p78 = por %p76, %p77
    %p79 = scmp.ne.s32.totalorder %s68, %s71
    %p80 = scmp.eq.s32.totalorder %s21, 1
    %p81 = por %p79, %p80
    %p82 = scmp.ne.s32.totalorder %s71, %s72
    %p83 = scmp.eq.s32.totalorder %s21, 0
    %p84 = por %p82, %p83
    %p85 = scmp.ne.s32.totalorder %s71, %s72
    %p86 = scmp.eq.s32.totalorder %s22, 1
    %p87 = por %p85, %p86
    %p89 = scmp.ne.s32.totalorder %s72, %s88
    %p90 = scmp.eq.s32.totalorder %s22, 0
    %p91 = por %p89, %p90
    %s92 = ssub.s32 %s23, %s35
    %s93 = ssub.s32 %s24, %s31
    %s94 = sor.u32 %s92, %s93
    %p95 = scmp.eq.s32.totalorder %s94, 0
    %s97 = sadd.s32 %s96, 1
    %s98 = scalar_select %p95, %s96, %s97
    %p101 = pneg %p95
    %p102 = scmp.eq.s32.totalorder %s16, 1
    %p103 = por %p101, %p102
    %p104 = scmp.ne.s32.totalorder %s96, %s99
    %p105 = scmp.eq.s32.totalorder %s16, 0
    %p106 = por %p104, %p105
    %p107 = scmp.ne.s32.totalorder %s96, %s99
    %p108 = scmp.eq.s32.totalorder %s21, 1
    %p109 = por %p107, %p108
    %p110 = scmp.ne.s32.totalorder %s99, %s100
    %p111 = scmp.eq.s32.totalorder %s21, 0
    %p112 = por %p110, %p111
    %p113 = scmp.ne.s32.totalorder %s99, %s100
    %p114 = scmp.eq.s32.totalorder %s22, 1
    %p115 = por %p113, %p114
    %p117 = scmp.ne.s32.totalorder %s100, %s116
    %p118 = scmp.eq.s32.totalorder %s22, 0
    %p119 = por %p117, %p118
    %s120 = ssub.s32 %s24, %s31
    %p121 = scmp.eq.s32.totalorder %s120, 0
    %s123 = sadd.s32 %s122, 1
    %s124 = scalar_select %p121, %s122, %s123
    %p127 = pneg %p121
    %p128 = scmp.eq.s32.totalorder %s16, 1
    %p129 = por %p127, %p128
    %p130 = scmp.ne.s32.totalorder %s122, %s125
    %p131 = scmp.eq.s32.totalorder %s16, 0
    %p132 = por %p130, %p131
    %p133 = scmp.ne.s32.totalorder %s122, %s125
    %p134 = scmp.eq.s32.totalorder %s21, 1
    %p135 = por %p133, %p134
    %p136 = scmp.ne.s32.totalorder %s125, %s126
    %p137 = scmp.eq.s32.totalorder %s21, 0
    %p138 = por %p136, %p137
    %p139 = scmp.ne.s32.totalorder %s125, %s126
    %p140 = scmp.eq.s32.totalorder %s22, 1
    %p141 = por %p139, %p140
    %p143 = scmp.ne.s32.totalorder %s126, %s142
    %p144 = scmp.eq.s32.totalorder %s22, 0
    %p145 = por %p143, %p144
    %s147 = sadd.s32 %s146, 1
    %p150 = scmp.eq.s32.totalorder %s16, 1
    %p151 = scmp.ne.s32.totalorder %s146, %s148
    %p152 = scmp.eq.s32.totalorder %s16, 0
    %p153 = por %p151, %p152
    %p154 = scmp.ne.s32.totalorder %s146, %s148
    %p155 = scmp.eq.s32.totalorder %s21, 1
    %p156 = por %p154, %p155
    %p157 = scmp.ne.s32.totalorder %s148, %s149
    %p158 = scmp.eq.s32.totalorder %s21, 0
    %p159 = por %p157, %p158
    %p160 = scmp.ne.s32.totalorder %s148, %s149
    %p161 = scmp.eq.s32.totalorder %s22, 1
    %p162 = por %p160, %p161
    %p164 = scmp.ne.s32.totalorder %s149, %s163
    %p165 = scmp.eq.s32.totalorder %s22, 0
    %p166 = por %p164, %p165
    %s168 = sadd.s32 %s167, 1
    %p171 = scmp.eq.s32.totalorder %s16, 1
    %p172 = scmp.ne.s32.totalorder %s167, %s169
    %p173 = scmp.eq.s32.totalorder %s16, 0
    %p174 = por %p172, %p173
    %p175 = scmp.ne.s32.totalorder %s167, %s169
    %p176 = scmp.eq.s32.totalorder %s21, 1
    %p177 = por %p175, %p176
    %p178 = scmp.ne.s32.totalorder %s169, %s170
    %p179 = scmp.eq.s32.totalorder %s21, 0
    %p180 = por %p178, %p179
    %p181 = scmp.ne.s32.totalorder %s169, %s170
    %p182 = scmp.eq.s32.totalorder %s22, 1
    %p183 = por %p181, %p182
    %p185 = scmp.ne.s32.totalorder %s170, %s184
    %p186 = scmp.eq.s32.totalorder %s22, 0
    %p187 = por %p185, %p186
    %s189 = sadd.s32 %s188, 1
    %p192 = scmp.eq.s32.totalorder %s16, 1
    %p193 = scmp.ne.s32.totalorder %s188, %s190
    %p194 = scmp.eq.s32.totalorder %s16, 0
    %p195 = por %p193, %p194
    %p196 = scmp.ne.s32.totalorder %s188, %s190
    %p197 = scmp.eq.s32.totalorder %s21, 1
    %p198 = por %p196, %p197
    %p199 = scmp.ne.s32.totalorder %s190, %s191
    %p200 = scmp.eq.s32.totalorder %s21, 0
    %p201 = por %p199, %p200
    %p202 = scmp.ne.s32.totalorder %s190, %s191
    %p203 = scmp.eq.s32.totalorder %s22, 1
    %p204 = por %p202, %p203
    %p206 = scmp.ne.s32.totalorder %s191, %s205
    %p207 = scmp.eq.s32.totalorder %s22, 0
    %p208 = por %p206, %p207
    %s209 = ssub.s32 %s23, %s35
    %p210 = scmp.eq.s32.totalorder %s209, 0
    %s212 = sadd.s32 %s211, 1
    %s213 = scalar_select %p210, %s211, %s212
    %p216 = pneg %p210
    %p217 = scmp.eq.s32.totalorder %s16, 1
    %p218 = por %p216, %p217
    %p219 = scmp.ne.s32.totalorder %s211, %s214
    %p220 = scmp.eq.s32.totalorder %s16, 0
    %p221 = por %p219, %p220
    %p222 = scmp.ne.s32.totalorder %s211, %s214
    %p223 = scmp.eq.s32.totalorder %s21, 1
    %p224 = por %p222, %p223
    %p225 = scmp.ne.s32.totalorder %s214, %s215
    %p226 = scmp.eq.s32.totalorder %s21, 0
    %p227 = por %p225, %p226
    %p228 = scmp.ne.s32.totalorder %s214, %s215
    %p229 = scmp.eq.s32.totalorder %s22, 1
    %p230 = por %p228, %p229
    %p232 = scmp.ne.s32.totalorder %s215, %s231
    %p233 = scmp.eq.s32.totalorder %s22, 0
    %p234 = por %p232, %p233
    %s235 = ssub.s32 %s23, %s35
    %p236 = scmp.eq.s32.totalorder %s235, 0
    %s238 = sadd.s32 %s237, 1
    %s239 = scalar_select %p236, %s237, %s238
    %p242 = pneg %p236
    %p243 = scmp.eq.s32.totalorder %s16, 1
    %p244 = por %p242, %p243
    %p245 = scmp.ne.s32.totalorder %s237, %s240
    %p246 = scmp.eq.s32.totalorder %s16, 0
    %p247 = por %p245, %p246
    %p248 = scmp.ne.s32.totalorder %s237, %s240
    %p249 = scmp.eq.s32.totalorder %s21, 1
    %p250 = por %p248, %p249
    %p251 = scmp.ne.s32.totalorder %s240, %s241
    %p252 = scmp.eq.s32.totalorder %s21, 0
    %p253 = por %p251, %p252
    %p254 = scmp.ne.s32.totalorder %s240, %s241
    %p255 = scmp.eq.s32.totalorder %s22, 1
    %p256 = por %p254, %p255
    %p258 = scmp.ne.s32.totalorder %s241, %s257
    %p259 = scmp.eq.s32.totalorder %s22, 0
    %p260 = por %p258, %p259
    %s261 = ssub.s32 %s23, %s35
    %p262 = scmp.eq.s32.totalorder %s261, 0
    %s264 = sadd.s32 %s263, 1
    %s265 = scalar_select %p262, %s263, %s264
    %p268 = pneg %p262
    %p269 = scmp.eq.s32.totalorder %s16, 1
    %p270 = por %p268, %p269
    %p271 = scmp.ne.s32.totalorder %s263, %s266
    %p272 = scmp.eq.s32.totalorder %s16, 0
    %p273 = por %p271, %p272
    %p274 = scmp.ne.s32.totalorder %s263, %s266
    %p275 = scmp.eq.s32.totalorder %s21, 1
    %p276 = por %p274, %p275
    %p277 = scmp.ne.s32.totalorder %s266, %s267
    %p278 = scmp.eq.s32.totalorder %s21, 0
    %p279 = por %p277, %p278
    %p280 = scmp.ne.s32.totalorder %s266, %s267
    %p281 = scmp.eq.s32.totalorder %s22, 1
    %p282 = por %p280, %p281
    %p284 = scmp.ne.s32.totalorder %s267, %s283
    %p285 = scmp.eq.s32.totalorder %s22, 0
    %p286 = por %p284, %p285
    %p287 = scmp.le.s32.totalorder 1, %s16
    %p288 = scmp.lt.s32.totalorder %s16, 3
    %p289 = pnand %p287, %p288
    %p290 = pneg %p289
    // Predicated region
    $region9: #{tripletnet_forward.1} parent=5 // pred_check
      _
    $region10: #{tripletnet_forward.1} parent=5 // pred_check_branch
      %292 = sbr.rel (%p289) target = $region12
    $region11: #{tripletnet_forward.1} parent=5 // pred_region
      %s293 = ssub.s32 %s16, 1
      // Predicated region
      $region13: #{tripletnet_forward.1} parent=11 // pred_check
        %p294 = pneg %p159
      $region14: #{tripletnet_forward.1} parent=11 // pred_check_branch
        %296 = sbr.rel (%p294) target = $region16
      $region15: #{tripletnet_forward.1} parent=11 // pred_region
        _
      $region16: #{tripletnet_forward.1} parent=11 // pred_fallthru
        _
      // Predicated region
      $region17: #{tripletnet_forward.1} parent=11 // pred_check
        %p297 = pneg %p180
      $region18: #{tripletnet_forward.1} parent=11 // pred_check_branch
        %299 = sbr.rel (%p297) target = $region20
      $region19: #{tripletnet_forward.1} parent=11 // pred_region
        _
      $region20: #{tripletnet_forward.1} parent=11 // pred_fallthru
        _
      // Predicated region
      $region21: #{tripletnet_forward.1} parent=11 // pred_check
        %p300 = pneg %p201
      $region22: #{tripletnet_forward.1} parent=11 // pred_check_branch
        %302 = sbr.rel (%p300) target = $region24
      $region23: #{tripletnet_forward.1} parent=11 // pred_region
        _
      $region24: #{tripletnet_forward.1} parent=11 // pred_fallthru
        _
    $region12: #{tripletnet_forward.1} parent=5 // pred_fallthru
      _
    %p303 = scmp.lt.s32.totalorder %s16, 2
    // Predicated region
    $region25: #{tripletnet_forward.1} parent=5 // pred_check
      %p304 = pneg %p303
    $region26: #{tripletnet_forward.1} parent=5 // pred_check_branch
      %306 = sbr.rel (%p304) target = $region28
    $region27: #{tripletnet_forward.1} parent=5 // pred_region
      // Predicated region
      $region29: #{tripletnet_forward.1} parent=27 // pred_check
        %p307 = pneg %p50
      $region30: #{tripletnet_forward.1} parent=27 // pred_check_branch
        %309 = sbr.rel (%p307) target = $region32
      $region31: #{tripletnet_forward.1} parent=27 // pred_region
        %s310 = smul.u32 4, %s24
        %p311 = scmp.lt.s32.totalorder %s23, 0
        %s312 = scalar_select %p311, %s23, 0
        %p313 = scmp.lt.s32.totalorder %s310, 7
        %s314 = scalar_select %p313, %s310, 7
        %s315 = smul.addr %s312, 8
        %s316 = sadd.s32 %s314, %s315
        %s317 = smul.addr %s316, 8
        %s318 = scalar_lea.vmem %s0, %s317
        %s319 = smul.u32 4, %s24
      $region32: #{tripletnet_forward.1} parent=27 // pred_fallthru
        _
      // Predicated region
      $region33: #{tripletnet_forward.1} parent=27 // pred_check
        %p320 = pneg %p78
      $region34: #{tripletnet_forward.1} parent=27 // pred_check_branch
        %322 = sbr.rel (%p320) target = $region36
      $region35: #{tripletnet_forward.1} parent=27 // pred_region
        %s323 = smul.u32 4, %s24
        %p324 = scmp.lt.s32.totalorder %s23, 0
        %s325 = scalar_select %p324, %s23, 0
        %p326 = scmp.lt.s32.totalorder %s323, 7
        %s327 = scalar_select %p326, %s323, 7
        %s328 = smul.addr %s325, 8
        %s329 = sadd.s32 %s327, %s328
        %s330 = smul.addr %s329, 8
        %s331 = scalar_lea.vmem %s1, %s330
        %s332 = smul.u32 4, %s24
      $region36: #{tripletnet_forward.1} parent=27 // pred_fallthru
        _
      // Predicated region
      $region37: #{tripletnet_forward.1} parent=27 // pred_check
        %p333 = pneg %p106
      $region38: #{tripletnet_forward.1} parent=27 // pred_check_branch
        %335 = sbr.rel (%p333) target = $region40
      $region39: #{tripletnet_forward.1} parent=27 // pred_region
        %s336 = smul.u32 4, %s24
        %p337 = scmp.lt.s32.totalorder %s23, 0
        %s338 = scalar_select %p337, %s23, 0
        %p339 = scmp.lt.s32.totalorder %s336, 7
        %s340 = scalar_select %p339, %s336, 7
        %s341 = smul.addr %s338, 8
        %s342 = sadd.s32 %s340, %s341
        %s343 = smul.addr %s342, 8
        %s344 = scalar_lea.vmem %s2, %s343
        %s345 = smul.u32 4, %s24
      $region40: #{tripletnet_forward.1} parent=27 // pred_fallthru
        _
      // Predicated region
      $region41: #{tripletnet_forward.1} parent=27 // pred_check
        %p346 = pneg %p132
      $region42: #{tripletnet_forward.1} parent=27 // pred_check_branch
        %348 = sbr.rel (%p346) target = $region44
      $region43: #{tripletnet_forward.1} parent=27 // pred_region
        %s349 = smul.u32 64, %s24
        %p350 = scmp.lt.s32.totalorder %s349, 127
        %s351 = scalar_select %p350, %s349, 127
        %s352 = smul.addr %s351, 8
        %s353 = scalar_lea.vmem %s3, %s352
        %s354 = smul.u32 64, %s24
      $region44: #{tripletnet_forward.1} parent=27 // pred_fallthru
        _
    $region28: #{tripletnet_forward.1} parent=5 // pred_fallthru
      _
    %p355 = scmp.le.s32.totalorder 1, %s16
    %p356 = scmp.lt.s32.totalorder %s16, 3
    %p357 = pnand %p355, %p356
    %p358 = pneg %p357
    // Predicated region
    $region45: #{tripletnet_forward.1} parent=5 // pred_check
      _
    $region46: #{tripletnet_forward.1} parent=5 // pred_check_branch
      %360 = sbr.rel (%p357) target = $region48
    $region47: #{tripletnet_forward.1} parent=5 // pred_region
      %s361 = ssub.s32 %s16, 1
      %s362 = smul.u32 4, %s26
      %p363 = scmp.lt.s32.totalorder %s25, 0
      %s364 = scalar_select %p363, %s25, 0
      %p365 = scmp.lt.s32.totalorder %s362, 7
      %s366 = scalar_select %p365, %s362, 7
      %s367 = smul.addr %s364, 8
      %s368 = sadd.s32 %s366, %s367
      %s369 = smul.addr %s368, 8
      %s370 = scalar_lea.vmem %s0, %s369
      %p371 = pneg %p56
      %p372 = pneg %p53
      %s373 = smul.u32 4, %s26
      %p374 = scmp.lt.s32.totalorder %s25, 0
      %s375 = scalar_select %p374, %s25, 0
      %p376 = scmp.lt.s32.totalorder %s373, 7
      %s377 = scalar_select %p376, %s373, 7
      %s378 = smul.addr %s375, 8
      %s379 = sadd.s32 %s377, %s378
      %s380 = smul.addr %s379, 8
      %s381 = scalar_lea.vmem %s1, %s380
      %p382 = pneg %p84
      %p383 = pneg %p81
      %s384 = smul.u32 4, %s26
      %p385 = scmp.lt.s32.totalorder %s25, 0
      %s386 = scalar_select %p385, %s25, 0
      %p387 = scmp.lt.s32.totalorder %s384, 7
      %s388 = scalar_select %p387, %s384, 7
      %s389 = smul.addr %s386, 8
      %s390 = sadd.s32 %s388, %s389
      %s391 = smul.addr %s390, 8
      %s392 = scalar_lea.vmem %s2, %s391
      %p393 = pneg %p112
      %p394 = pneg %p109
      %s395 = smul.u32 64, %s26
      %p396 = scmp.lt.s32.totalorder %s395, 127
      %s397 = scalar_select %p396, %s395, 127
      %s398 = smul.addr %s397, 8
      %s399 = scalar_lea.vmem %s3, %s398
      %p400 = pneg %p138
      %p401 = pneg %p135
      %p402 = pneg %p159
      %p403 = pneg %p156
      %p404 = pneg %p180
      %p405 = pneg %p177
      %p406 = pneg %p201
      %p407 = pneg %p198
      %p408 = pneg %p227
      %p409 = pneg %p224
      %p410 = scmp.lt.s32.totalorder %s25, 0
      %s411 = scalar_select %p410, %s25, 0
      %s412 = smul.addr %s411, 8
      %s413 = scalar_lea.vmem %s7, %s412
      %p414 = pneg %p253
      %p415 = pneg %p250
      %p416 = scmp.lt.s32.totalorder %s25, 0
      %s417 = scalar_select %p416, %s25, 0
      %s418 = smul.addr %s417, 8
      %s419 = scalar_lea.vmem %s8, %s418
      %p420 = pneg %p279
      %p421 = pneg %p276
      %p422 = scmp.lt.s32.totalorder %s25, 0
      %s423 = scalar_select %p422, %s25, 0
      %s424 = smul.addr %s423, 8
      %s425 = scalar_lea.vmem %s9, %s424
      %s426 = smul.u32 4, %s26
      %p427 = scmp.lt.s32.totalorder %s25, 0
      %s428 = scalar_select %p427, %s25, 0
      %p429 = scmp.lt.s32.totalorder %s426, 7
      %s430 = scalar_select %p429, %s426, 7
      %s431 = smul.addr %s428, 8
      %s432 = sadd.s32 %s430, %s431
      %s433 = smul.addr %s432, 8
      %s434 = scalar_lea.vmem %s0, %s433
      %s435 = smul.u32 4, %s26
      %s436 = smul.u32 4, %s26
      %p437 = scmp.lt.s32.totalorder %s25, 0
      %s438 = scalar_select %p437, %s25, 0
      %p439 = scmp.lt.s32.totalorder %s436, 7
      %s440 = scalar_select %p439, %s436, 7
      %s441 = smul.addr %s438, 8
      %s442 = sadd.s32 %s440, %s441
      %s443 = smul.addr %s442, 8
      %s444 = scalar_lea.vmem %s1, %s443
      %s445 = smul.u32 4, %s26
      %s446 = smul.u32 4, %s26
      %p447 = scmp.lt.s32.totalorder %s25, 0
      %s448 = scalar_select %p447, %s25, 0
      %p449 = scmp.lt.s32.totalorder %s446, 7
      %s450 = scalar_select %p449, %s446, 7
      %s451 = smul.addr %s448, 8
      %s452 = sadd.s32 %s450, %s451
      %s453 = smul.addr %s452, 8
      %s454 = scalar_lea.vmem %s2, %s453
      %s455 = smul.u32 4, %s26
      %s456 = smul.u32 64, %s26
      %p457 = scmp.lt.s32.totalorder %s456, 127
      %s458 = scalar_select %p457, %s456, 127
      %s459 = smul.addr %s458, 8
      %s460 = scalar_lea.vmem %s3, %s459
      %s461 = smul.u32 64, %s26
      %p462 = scmp.lt.s32.totalorder %s25, 0
      %s463 = scalar_select %p462, %s25, 0
      %s464 = smul.addr %s463, 8
      %s465 = scalar_lea.vmem %s7, %s464
      %p466 = scmp.lt.s32.totalorder %s25, 0
      %s467 = scalar_select %p466, %s25, 0
      %s468 = smul.addr %s467, 8
      %s469 = scalar_lea.vmem %s8, %s468
      %p470 = scmp.lt.s32.totalorder %s25, 0
      %s471 = scalar_select %p470, %s25, 0
      %s472 = smul.addr %s471, 8
      %s473 = scalar_lea.vmem %s9, %s472
      %p474 = scmp.eq.s32.totalorder %s26, 0
      // Predicated region
      $region49: #{tripletnet_forward.1} parent=47 // pred_check
        %p475 = pneg %p474
      $region50: #{tripletnet_forward.1} parent=47 // pred_check_branch
        %477 = sbr.rel (%p475) target = $region52
      $region51: #{tripletnet_forward.1} parent=47 // pred_region
        %478 = vst [vmem:[#allocation2] sm:$0xff] 0.0
        %479 = vst [vmem:[#allocation2 + $0x8] sm:$0xff] 0.0
        %480 = vst [vmem:[#allocation2 + $0x10] sm:$0xff] 0.0
      $region52: #{tripletnet_forward.1} parent=47 // pred_fallthru
        _
      %v481 = vld [vmem:[%s434] sm:$0xff]
      %v482 = vld [vmem:[%s434 + $0x8] sm:$0xff]
      %v483 = vld [vmem:[%s434 + $0x10] sm:$0xff]
      %v484 = vld [vmem:[%s434 + $0x18] sm:$0xff]
      %v485 = vld [vmem:[%s444] sm:$0xff]
      %v486 = vld [vmem:[%s444 + $0x8] sm:$0xff]
      %v487 = vld [vmem:[%s444 + $0x10] sm:$0xff]
      %v488 = vld [vmem:[%s444 + $0x18] sm:$0xff]
      %v489 = vld [vmem:[%s454] sm:$0xff]
      %v490 = vld [vmem:[%s454 + $0x8] sm:$0xff]
      %v491 = vld [vmem:[%s454 + $0x10] sm:$0xff]
      %v492 = vld [vmem:[%s454 + $0x18] sm:$0xff]
      %v493 = vld [vmem:[#allocation2] sm:$0xff]
      %v494 = vld [vmem:[#allocation2 + $0x8] sm:$0xff]
      %v495 = vld [vmem:[#allocation2 + $0x10] sm:$0xff]
      %v496 = vld [vmem:[%s460] sm:$0xff]
      %v497 = vld [vmem:[%s460 + $0x8] sm:$0xff]
      %v498 = vld [vmem:[%s460 + $0x10] sm:$0xff]
      %v499 = vld [vmem:[%s460 + $0x18] sm:$0xff]
      %v500 = vld [vmem:[%s460 + $0x20] sm:$0xff]
      %v501 = vld [vmem:[%s460 + $0x28] sm:$0xff]
      %v502 = vld [vmem:[%s460 + $0x30] sm:$0xff]
      %v503 = vld [vmem:[%s460 + $0x38] sm:$0xff]
      %v504 = vld [vmem:[%s460 + $0x40] sm:$0xff]
      %v505 = vld [vmem:[%s460 + $0x48] sm:$0xff]
      %v506 = vld [vmem:[%s460 + $0x50] sm:$0xff]
      %v507 = vld [vmem:[%s460 + $0x58] sm:$0xff]
      %v508 = vld [vmem:[%s460 + $0x60] sm:$0xff]
      %v509 = vld [vmem:[%s460 + $0x68] sm:$0xff]
      %v510 = vld [vmem:[%s460 + $0x70] sm:$0xff]
      %v511 = vld [vmem:[%s460 + $0x78] sm:$0xff]
      %v512 = vld [vmem:[%s460 + $0x80] sm:$0xff]
      %v513 = vld [vmem:[%s460 + $0x88] sm:$0xff]
      %v514 = vld [vmem:[%s460 + $0x90] sm:$0xff]
      %v515 = vld [vmem:[%s460 + $0x98] sm:$0xff]
      %v516 = vld [vmem:[%s460 + $0xa0] sm:$0xff]
      %v517 = vld [vmem:[%s460 + $0xa8] sm:$0xff]
      %v518 = vld [vmem:[%s460 + $0xb0] sm:$0xff]
      %v519 = vld [vmem:[%s460 + $0xb8] sm:$0xff]
      %v520 = vld [vmem:[%s460 + $0xc0] sm:$0xff]
      %v521 = vld [vmem:[%s460 + $0xc8] sm:$0xff]
      %v522 = vld [vmem:[%s460 + $0xd0] sm:$0xff]
      %v523 = vld [vmem:[%s460 + $0xd8] sm:$0xff]
      %v524 = vld [vmem:[%s460 + $0xe0] sm:$0xff]
      %v525 = vld [vmem:[%s460 + $0xe8] sm:$0xff]
      %v526 = vld [vmem:[%s460 + $0xf0] sm:$0xff]
      %v527 = vld [vmem:[%s460 + $0xf8] sm:$0xff]
      %v528 = vld [vmem:[%s460 + $0x100] sm:$0xff]
      %v529 = vld [vmem:[%s460 + $0x108] sm:$0xff]
      %v530 = vld [vmem:[%s460 + $0x110] sm:$0xff]
      %v531 = vld [vmem:[%s460 + $0x118] sm:$0xff]
      %v532 = vld [vmem:[%s460 + $0x120] sm:$0xff]
      %v533 = vld [vmem:[%s460 + $0x128] sm:$0xff]
      %v534 = vld [vmem:[%s460 + $0x130] sm:$0xff]
      %v535 = vld [vmem:[%s460 + $0x138] sm:$0xff]
      %v536 = vld [vmem:[%s460 + $0x140] sm:$0xff]
      %v537 = vld [vmem:[%s460 + $0x148] sm:$0xff]
      %v538 = vld [vmem:[%s460 + $0x150] sm:$0xff]
      %v539 = vld [vmem:[%s460 + $0x158] sm:$0xff]
      %v540 = vld [vmem:[%s460 + $0x160] sm:$0xff]
      %v541 = vld [vmem:[%s460 + $0x168] sm:$0xff]
      %v542 = vld [vmem:[%s460 + $0x170] sm:$0xff]
      %v543 = vld [vmem:[%s460 + $0x178] sm:$0xff]
      %v544 = vld [vmem:[%s460 + $0x180] sm:$0xff]
      %v545 = vld [vmem:[%s460 + $0x188] sm:$0xff]
      %v546 = vld [vmem:[%s460 + $0x190] sm:$0xff]
      %v547 = vld [vmem:[%s460 + $0x198] sm:$0xff]
      %v548 = vld [vmem:[%s460 + $0x1a0] sm:$0xff]
      %v549 = vld [vmem:[%s460 + $0x1a8] sm:$0xff]
      %v550 = vld [vmem:[%s460 + $0x1b0] sm:$0xff]
      %v551 = vld [vmem:[%s460 + $0x1b8] sm:$0xff]
      %v552 = vld [vmem:[%s460 + $0x1c0] sm:$0xff]
      %v553 = vld [vmem:[%s460 + $0x1c8] sm:$0xff]
      %v554 = vld [vmem:[%s460 + $0x1d0] sm:$0xff]
      %v555 = vld [vmem:[%s460 + $0x1d8] sm:$0xff]
      %v556 = vld [vmem:[%s460 + $0x1e0] sm:$0xff]
      %v557 = vld [vmem:[%s460 + $0x1e8] sm:$0xff]
      %v558 = vld [vmem:[%s460 + $0x1f0] sm:$0xff]
      %v559 = vld [vmem:[%s460 + $0x1f8] sm:$0xff]
      %560 = vmatpush.msra.mxu0 %v511
      %561 = vmatpush.msra.mxu0 %v510
      %562 = vmatpush.msra.mxu0 %v509
      %563 = vmatpush.msra.mxu0 %v508
      %564 = vmatpush.msra.mxu0 %v507
      %565 = vmatpush.msra.mxu0 %v506
      %566 = vmatpush.msra.mxu0 %v505
      %567 = vmatpush.msra.mxu0 %v504
      %568 = vmatpush.msra.mxu0 %v503
      %569 = vmatpush.msra.mxu0 %v502
      %570 = vmatpush.msra.mxu0 %v501
      %571 = vmatpush.msra.mxu0 %v500
      %572 = vmatpush.msra.mxu0 %v499
      %573 = vmatpush.msra.mxu0 %v498
      %574 = vmatpush.msra.mxu0 %v497
      %575 = vmatpush.msra.mxu0 %v496
      %576 = vmatmul.f32.gmra.mxu0 %v481
      %v577 = vpop.f32.mrf.mxu0
      %v578 = vadd.f32 0.0, %v577
      %579 = vmatmul.f32.gmra.mxu0 %v485
      %v580 = vpop.f32.mrf.mxu0
      %v581 = vadd.f32 0.0, %v580
      %582 = vmatmul.f32.gmra.mxu0 %v489
      %v583 = vpop.f32.mrf.mxu0
      %v584 = vadd.f32 0.0, %v583
      %585 = vdwg.mxu0
      %586 = vmatpush.msra.mxu0 %v527
      %587 = vmatpush.msra.mxu0 %v526
      %588 = vmatpush.msra.mxu0 %v525
      %589 = vmatpush.msra.mxu0 %v524
      %590 = vmatpush.msra.mxu0 %v523
      %591 = vmatpush.msra.mxu0 %v522
      %592 = vmatpush.msra.mxu0 %v521
      %593 = vmatpush.msra.mxu0 %v520
      %594 = vmatpush.msra.mxu0 %v519
      %595 = vmatpush.msra.mxu0 %v518
      %596 = vmatpush.msra.mxu0 %v517
      %597 = vmatpush.msra.mxu0 %v516
      %598 = vmatpush.msra.mxu0 %v515
      %599 = vmatpush.msra.mxu0 %v514
      %600 = vmatpush.msra.mxu0 %v513
      %601 = vmatpush.msra.mxu0 %v512
      %602 = vmatmul.f32.gmra.mxu0 %v482
      %v603 = vpop.f32.mrf.mxu0
      %v604 = vadd.f32 %v578, %v603
      %605 = vmatmul.f32.gmra.mxu0 %v486
      %v606 = vpop.f32.mrf.mxu0
      %v607 = vadd.f32 %v581, %v606
      %608 = vmatmul.f32.gmra.mxu0 %v490
      %v609 = vpop.f32.mrf.mxu0
      %v610 = vadd.f32 %v584, %v609
      %611 = vdwg.mxu0
      %612 = vmatpush.msra.mxu0 %v543
      %613 = vmatpush.msra.mxu0 %v542
      %614 = vmatpush.msra.mxu0 %v541
      %615 = vmatpush.msra.mxu0 %v540
      %616 = vmatpush.msra.mxu0 %v539
      %617 = vmatpush.msra.mxu0 %v538
      %618 = vmatpush.msra.mxu0 %v537
      %619 = vmatpush.msra.mxu0 %v536
      %620 = vmatpush.msra.mxu0 %v535
      %621 = vmatpush.msra.mxu0 %v534
      %622 = vmatpush.msra.mxu0 %v533
      %623 = vmatpush.msra.mxu0 %v532
      %624 = vmatpush.msra.mxu0 %v531
      %625 = vmatpush.msra.mxu0 %v530
      %626 = vmatpush.msra.mxu0 %v529
      %627 = vmatpush.msra.mxu0 %v528
      %628 = vmatmul.f32.gmra.mxu0 %v483
      %v629 = vpop.f32.mrf.mxu0
      %v630 = vadd.f32 %v604, %v629
      %631 = vmatmul.f32.gmra.mxu0 %v487
      %v632 = vpop.f32.mrf.mxu0
      %v633 = vadd.f32 %v607, %v632
      %634 = vmatmul.f32.gmra.mxu0 %v491
      %v635 = vpop.f32.mrf.mxu0
      %v636 = vadd.f32 %v610, %v635
      %637 = vdwg.mxu0
      %638 = vmatpush.msra.mxu0 %v559
      %639 = vmatpush.msra.mxu0 %v558
      %640 = vmatpush.msra.mxu0 %v557
      %641 = vmatpush.msra.mxu0 %v556
      %642 = vmatpush.msra.mxu0 %v555
      %643 = vmatpush.msra.mxu0 %v554
      %644 = vmatpush.msra.mxu0 %v553
      %645 = vmatpush.msra.mxu0 %v552
      %646 = vmatpush.msra.mxu0 %v551
      %647 = vmatpush.msra.mxu0 %v550
      %648 = vmatpush.msra.mxu0 %v549
      %649 = vmatpush.msra.mxu0 %v548
      %650 = vmatpush.msra.mxu0 %v547
      %651 = vmatpush.msra.mxu0 %v546
      %652 = vmatpush.msra.mxu0 %v545
      %653 = vmatpush.msra.mxu0 %v544
      %654 = vmatmul.f32.gmra.mxu0 %v484
      %v655 = vpop.f32.mrf.mxu0
      %v656 = vadd.f32 %v630, %v655
      %657 = vmatmul.f32.gmra.mxu0 %v488
      %v658 = vpop.f32.mrf.mxu0
      %v659 = vadd.f32 %v633, %v658
      %660 = vmatmul.f32.gmra.mxu0 %v492
      %v661 = vpop.f32.mrf.mxu0
      %v662 = vadd.f32 %v636, %v661
      %663 = vdwg.mxu0
      %v664 = vadd.f32 %v493, %v656
      %v665 = vadd.f32 %v494, %v659
      %v666 = vadd.f32 %v495, %v662
      %667 = vst [vmem:[#allocation2] sm:$0xff] %v664
      %668 = vst [vmem:[#allocation2 + $0x8] sm:$0xff] %v665
      %669 = vst [vmem:[#allocation2 + $0x10] sm:$0xff] %v666
      %p670 = scmp.eq.s32.totalorder %s26, 1
      // Predicated region
      $region53: #{tripletnet_forward.1} parent=47 // pred_check
        %p671 = pneg %p670
      $region54: #{tripletnet_forward.1} parent=47 // pred_check_branch
        %673 = sbr.rel (%p671) target = $region56
      $region55: #{tripletnet_forward.1} parent=47 // pred_region
        %v674 = vld [vmem:[#allocation2] sm:$0xff]
        %v675 = vld [vmem:[#allocation2 + $0x8] sm:$0xff]
        %v676 = vld [vmem:[#allocation2 + $0x10] sm:$0xff]
        %v677 = vld [vmem:[%s4] sm:$0x1]
        %v679 = vperm.slane %v677, 0
        %v681 = vadd.f32 %v674, %v679
        %v682 = vadd.f32 %v675, %v679
        %v683 = vadd.f32 %v676, %v679
        %v684 = vmax.f32 %v681, 0.0
        %v685 = vmax.f32 %v682, 0.0
        %v686 = vmax.f32 %v683, 0.0
        %v687 = vld [vmem:[%s5] sm:$0xff]
        %v688 = vld [vmem:[%s5 + $0x8] sm:$0xff]
        %v689 = vld [vmem:[%s5 + $0x10] sm:$0xff]
        %v690 = vld [vmem:[%s5 + $0x18] sm:$0xff]
        %v691 = vld [vmem:[%s5 + $0x20] sm:$0xff]
        %v692 = vld [vmem:[%s5 + $0x28] sm:$0xff]
        %v693 = vld [vmem:[%s5 + $0x30] sm:$0xff]
        %v694 = vld [vmem:[%s5 + $0x38] sm:$0xff]
        %v695 = vld [vmem:[%s5 + $0x40] sm:$0xff]
        %v696 = vld [vmem:[%s5 + $0x48] sm:$0xff]
        %v697 = vld [vmem:[%s5 + $0x50] sm:$0xff]
        %v698 = vld [vmem:[%s5 + $0x58] sm:$0xff]
        %v699 = vld [vmem:[%s5 + $0x60] sm:$0xff]
        %v700 = vld [vmem:[%s5 + $0x68] sm:$0xff]
        %v701 = vld [vmem:[%s5 + $0x70] sm:$0xff]
        %v702 = vld [vmem:[%s5 + $0x78] sm:$0xff]
        %v703 = vld [vmem:[%s6] sm:$0x1]
        %v705 = vperm.slane %v703, 0
        %707 = vmatpush.msra.mxu0 %v702
        %708 = vmatpush.msra.mxu0 %v701
        %709 = vmatpush.msra.mxu0 %v700
        %710 = vmatpush.msra.mxu0 %v699
        %711 = vmatpush.msra.mxu0 %v698
        %712 = vmatpush.msra.mxu0 %v697
        %713 = vmatpush.msra.mxu0 %v696
        %714 = vmatpush.msra.mxu0 %v695
        %715 = vmatpush.msra.mxu0 %v694
        %716 = vmatpush.msra.mxu0 %v693
        %717 = vmatpush.msra.mxu0 %v692
        %718 = vmatpush.msra.mxu0 %v691
        %719 = vmatpush.msra.mxu0 %v690
        %720 = vmatpush.msra.mxu0 %v689
        %721 = vmatpush.msra.mxu0 %v688
        %722 = vmatpush.msra.mxu0 %v687
        %723 = vmatmul.f32.gmra.mxu0 %v684
        %v724 = vpop.f32.mrf.mxu0
        %v725 = vadd.f32 %v705, %v724
        %726 = vmatmul.f32.gmra.mxu0 %v685
        %v727 = vpop.f32.mrf.mxu0
        %v728 = vadd.f32 %v705, %v727
        %729 = vmatmul.f32.gmra.mxu0 %v686
        %v730 = vpop.f32.mrf.mxu0
        %v731 = vadd.f32 %v705, %v730
        %732 = vdwg.mxu0
        %733 = vst [vmem:[%s465] sm:$0xff] %v725
        %734 = vst [vmem:[%s469] sm:$0xff] %v728
        %735 = vst [vmem:[%s473] sm:$0xff] %v731
      $region56: #{tripletnet_forward.1} parent=47 // pred_fallthru
        _
      %p736 = scmp.lt.s32.totalorder %s25, 0
      %s737 = scalar_select %p736, %s25, 0
      %s738 = smul.addr %s737, 8
      %s739 = scalar_lea.vmem %s7, %s738
      %p740 = scmp.lt.s32.totalorder %s25, 0
      %s741 = scalar_select %p740, %s25, 0
      %s742 = smul.addr %s741, 8
      %s743 = scalar_lea.vmem %s8, %s742
      %p744 = scmp.lt.s32.totalorder %s25, 0
      %s745 = scalar_select %p744, %s25, 0
      %s746 = smul.addr %s745, 8
      %s747 = scalar_lea.vmem %s9, %s746
      // Predicated region
      $region57: #{tripletnet_forward.1} parent=47 // pred_check
        %p748 = pneg %p224
      $region58: #{tripletnet_forward.1} parent=47 // pred_check_branch
        %750 = sbr.rel (%p748) target = $region60
      $region59: #{tripletnet_forward.1} parent=47 // pred_region
        _
      $region60: #{tripletnet_forward.1} parent=47 // pred_fallthru
        _
      // Predicated region
      $region61: #{tripletnet_forward.1} parent=47 // pred_check
        %p751 = pneg %p250
      $region62: #{tripletnet_forward.1} parent=47 // pred_check_branch
        %753 = sbr.rel (%p751) target = $region64
      $region63: #{tripletnet_forward.1} parent=47 // pred_region
        _
      $region64: #{tripletnet_forward.1} parent=47 // pred_fallthru
        _
      // Predicated region
      $region65: #{tripletnet_forward.1} parent=47 // pred_check
        %p754 = pneg %p276
      $region66: #{tripletnet_forward.1} parent=47 // pred_check_branch
        %756 = sbr.rel (%p754) target = $region68
      $region67: #{tripletnet_forward.1} parent=47 // pred_region
        _
      $region68: #{tripletnet_forward.1} parent=47 // pred_fallthru
        _
      // Predicated region
      $region69: #{tripletnet_forward.1} parent=47 // pred_check
        %p757 = pneg %p224
      $region70: #{tripletnet_forward.1} parent=47 // pred_check_branch
        %759 = sbr.rel (%p757) target = $region72
      $region71: #{tripletnet_forward.1} parent=47 // pred_region
        %p760 = scmp.lt.s32.totalorder %s25, 0
        %s761 = scalar_select %p760, %s25, 0
        %s762 = smul.addr %s761, 8
        %s763 = scalar_lea.vmem %s7, %s762
      $region72: #{tripletnet_forward.1} parent=47 // pred_fallthru
        _
      // Predicated region
      $region73: #{tripletnet_forward.1} parent=47 // pred_check
        %p764 = pneg %p250
      $region74: #{tripletnet_forward.1} parent=47 // pred_check_branch
        %766 = sbr.rel (%p764) target = $region76
      $region75: #{tripletnet_forward.1} parent=47 // pred_region
        %p767 = scmp.lt.s32.totalorder %s25, 0
        %s768 = scalar_select %p767, %s25, 0
        %s769 = smul.addr %s768, 8
        %s770 = scalar_lea.vmem %s8, %s769
      $region76: #{tripletnet_forward.1} parent=47 // pred_fallthru
        _
      // Predicated region
      $region77: #{tripletnet_forward.1} parent=47 // pred_check
        %p771 = pneg %p276
      $region78: #{tripletnet_forward.1} parent=47 // pred_check_branch
        %773 = sbr.rel (%p771) target = $region80
      $region79: #{tripletnet_forward.1} parent=47 // pred_region
        %p774 = scmp.lt.s32.totalorder %s25, 0
        %s775 = scalar_select %p774, %s25, 0
        %s776 = smul.addr %s775, 8
        %s777 = scalar_lea.vmem %s9, %s776
      $region80: #{tripletnet_forward.1} parent=47 // pred_fallthru
        _
    $region48: #{tripletnet_forward.1} parent=5 // pred_fallthru
      _
    %p778 = scmp.le.s32.totalorder 2, %s16
    // Predicated region
    $region81: #{tripletnet_forward.1} parent=5 // pred_check
      %p779 = pneg %p778
    $region82: #{tripletnet_forward.1} parent=5 // pred_check_branch
      %781 = sbr.rel (%p779) target = $region84
    $region83: #{tripletnet_forward.1} parent=5 // pred_region
      %s782 = ssub.s32 %s16, 2
    $region84: #{tripletnet_forward.1} parent=5 // pred_fallthru
      _
  $region6: #{tripletnet_forward.1} parent=0 // loop_footer
    %s20 = sadd.s32 1, %s16
  $region7: #{tripletnet_forward.1} parent=0 // loop_footer_branch
    %15 = sbr.rel target = $region3
  $region8: #{tripletnet_forward.1} parent=0 // loop_exit
    _

</llo_original>
